<compile_context>
chip_gen: v5e
topology: v5e:2x2
jax: 0.10.0
libtpu: 0.0.40
codegen_flags: <defaults>
</compile_context>

<pallas_src>
import functools

import numpy as np
import jax
import jax.numpy as jnp
from jax.experimental import pallas as pl
from jax.experimental.pallas import tpu as pltpu


# ---------------------------------------------------------------------------
# Fused kernel: Q/K projections + all-head attention + fc_out, one grid step / batch
# ---------------------------------------------------------------------------
def _mha_kernel(xq_ref, wq_ref, bq_ref, wk_ref, bk_ref, vaug_ref, wo_ref, bo_ref,
                o_ref, *, num_heads, head_dim):
    H, Dh = num_heads, head_dim
    in_dim = H * Dh

    xq = xq_ref[...]                                           # (L, in_dim)
    vaug = vaug_ref[...]                                       # (H*L, 2*in_dim)
    kmask = vaug[:, in_dim:]                                   # block mask (H*L, in_dim)

    # Q/K projections in head-concatenated layout (block-diagonal kron weights,
    # 1/sqrt(Dh) scale folded into Q).  2 MXU ops.
    q2 = jnp.dot(xq, wq_ref[...], preferred_element_type=jnp.float32) + bq_ref[...]
    k2 = jnp.dot(xq, wk_ref[...], preferred_element_type=jnp.float32) + bk_ref[...]

    # All-head scores in ONE lane-dense MXU op: sublane-tile k2 H times, mask to the
    # block-diagonal, contract over the head-concat dim (NT matmul) -> (L, H*L).
    ktile = jnp.concatenate([k2] * H, axis=0) * kmask          # (H*L, in_dim)
    s = jax.lax.dot_general(q2, ktile, (((1,), (1,)), ((), ())),
                            preferred_element_type=jnp.float32)  # (L, H*L)

    # Segment softmax: one global per-row max (valid shift for every head segment;
    # assumes per-head score gaps stay far from exp underflow, true at these scales).
    p = jnp.exp(s - jnp.max(s, axis=-1, keepdims=True))         # (L, H*L)

    # P@V and the per-head denominators from the SAME matmul (vaug's extra columns
    # are the block mask, so they accumulate each head's segment sum, spread over Dh).
    pv = jnp.dot(p, vaug, preferred_element_type=jnp.float32)   # (L, 2*in_dim)
    o_un = pv[:, :in_dim]
    den = pv[:, in_dim:]
    inv = pl.reciprocal(den, approx=True)                       # EUP slot
    inv = inv * (2.0 - den * inv)                               # 1 Newton step (keeps 1e-4 tol)
    o_cat = o_un * inv                                          # head-concat attention output

    out = jnp.dot(o_cat, wo_ref[...], preferred_element_type=jnp.float32) + bo_ref[...]
    o_ref[...] = out.astype(o_ref.dtype)


# ---------------------------------------------------------------------------
# One-time host-side weight re-layout (review: hoist out of the per-call path)
# ---------------------------------------------------------------------------
def prepare_mha_params(params, in_dim, seq_len, num_heads):
    H, L = num_heads, seq_len
    Dh = in_dim // H
    assert Dh * H == in_dim, "in_dim must be divisible by num_heads"
    # TODO(synk): block-diagonal Q/K folding assumes in_dim % seq_len == 0 (true for
    # this module's config); other ratios need a generic (slower) gather path.
    assert in_dim % L == 0
    r = in_dim // L
    scale = 1.0 / float(Dh) ** 0.5
    f32 = jnp.float32
    eye_r = jnp.eye(r, dtype=f32)

    m = np.arange(H * L)
    blockmask = ((np.arange(in_dim)[None, :] // Dh) == (m[:, None] // L)).astype(np.float32)

    return {
        # torch's Q/K .view(B, L, H, Dh) folded into block-diagonal weights;
        # 1/sqrt(Dh) folded into the Q projection.
        "wq_big": (jnp.kron(eye_r, params["wq"].T) * scale).astype(f32),   # (in_dim, in_dim)
        "bq_big": (jnp.tile(params["bq"], r) * scale).reshape(1, in_dim).astype(f32),
        "wk_big": jnp.kron(eye_r, params["wk"].T).astype(f32),
        "bk_big": jnp.tile(params["bk"], r).reshape(1, in_dim).astype(f32),
        "wv_t": params["wv"].T.astype(f32),
        "bv": params["bv"].reshape(1, in_dim).astype(f32),
        "wo_t": params["wo"].T.astype(f32),
        "bo": params["bo"].reshape(1, in_dim).astype(f32),
        "blockmask": jnp.asarray(blockmask),                                # (H*L, in_dim)
        "eye_h": jnp.eye(H, dtype=f32),
    }


# ---------------------------------------------------------------------------
# Wrapper: value projection + re-layout in XLA, everything else in one pallas_call
# ---------------------------------------------------------------------------
def multi_head_attention(x, prep, num_heads):
    B, in_dim, L = x.shape
    H = num_heads
    Dh = in_dim // H
    f32 = jnp.float32

    # torch's .view / .permute of x (cheap XLA relayouts, done once).
    xq = x.reshape(B, L, in_dim)
    xv = jnp.transpose(x, (0, 2, 1))

    # Value projection + torch's .view(B, H, L, Dh) + block-diagonal spread, done in
    # XLA: this re-layout is pure data movement (review: drop the rep/msk gather
    # matmuls from the kernel).  vaug = [block-diag V | block mask] so one kernel
    # matmul yields both P@V and the per-head softmax denominators.
    v_raw = jnp.einsum("blc,cn->bln", xv, prep["wv_t"]) + prep["bv"]       # (B, L, in_dim)
    v4 = v_raw.reshape(B, H, L, Dh)
    vbd = (v4[:, :, :, None, :] * prep["eye_h"][None, :, None, :, None]
           ).reshape(B, H * L, in_dim)                                     # block-diag V
    ones_cols = jnp.broadcast_to(prep["blockmask"][None], (B, H * L, in_dim))
    vaug = jnp.concatenate([vbd, ones_cols], axis=-1)                      # (B, H*L, 2*in_dim)

    kern = functools.partial(_mha_kernel, num_heads=H, head_dim=Dh)

    def full(a):
        return pl.BlockSpec(a.shape, lambda b: (0,) * a.ndim)

    # grid=(B,) "parallel": one batch per v7x TensorCore when B=2; two short serial
    # steps on single-TC v5e/v6e.
    # TODO(synk): when B >= 4, pack 4 batches along the last axis for unmasked
    # 128-lane output stores (review item on lane-dense outputs).
    return pl.pallas_call(
        kern,
        out_shape=jax.ShapeDtypeStruct((B, L, in_dim), f32),
        grid=(B,),
        in_specs=[
            pl.BlockSpec((None, L, in_dim), lambda b: (b, 0, 0)),           # xq
            full(prep["wq_big"]), full(prep["bq_big"]),
            full(prep["wk_big"]), full(prep["bk_big"]),
            pl.BlockSpec((None, H * L, 2 * in_dim), lambda b: (b, 0, 0)),   # vaug
            full(prep["wo_t"]), full(prep["bo"]),
        ],
        out_specs=pl.BlockSpec((None, L, in_dim), lambda b: (b, 0, 0)),
        compiler_params=pltpu.CompilerParams(dimension_semantics=("parallel",)),
    )(xq, prep["wq_big"], prep["bq_big"], prep["wk_big"], prep["bk_big"],
      vaug, prep["wo_t"], prep["bo"])


# ---------------------------------------------------------------------------
# Pure-JAX reference (mirrors the PyTorch forward exactly)
# ---------------------------------------------------------------------------
def reference(x, p, num_heads):
    B, in_dim, seq_len = x.shape
    head_dim = in_dim // num_heads

    def lin(a, w, b):
        return jnp.einsum("bmk,nk->bmn", a, w) + b

    q_raw = lin(x, p["wq"], p["bq"])
    k_raw = lin(x, p["wk"], p["bk"])
    v_raw = lin(jnp.transpose(x, (0, 2, 1)), p["wv"], p["bv"])
    Q = q_raw.reshape(B, -1, num_heads, head_dim).transpose(0, 2, 1, 3)
    K = k_raw.reshape(B, -1, num_heads, head_dim).transpose(0, 2, 1, 3)
    V = v_raw.reshape(B, num_heads, -1, head_dim)
    s = jnp.einsum("bhqd,bhkd->bhqk", Q, K) / (head_dim ** 0.5)
    p_attn = jax.nn.softmax(s, axis=-1)
    O = jnp.einsum("bhqk,bhkd->bhqd", p_attn, V)
    concat = jnp.transpose(O, (0, 2, 1, 3)).reshape(B, -1, num_heads * head_dim)
    return lin(concat, p["wo"], p["bo"])


if __name__ == "__main__":
    B, in_dim, seq_len, num_heads = 2, 32, 16, 8

    key = jax.random.PRNGKey(0)
    ks = jax.random.split(key, 9)
    x = jax.random.normal(ks[0], (B, in_dim, seq_len), jnp.float32)

    params = {
        # nn.Linear(seq_len, seq_len)
        "wq": 0.1 * jax.random.normal(ks[1], (seq_len, seq_len), jnp.float32),
        "bq": 0.1 * jax.random.normal(ks[2], (seq_len,), jnp.float32),
        "wk": 0.1 * jax.random.normal(ks[3], (seq_len, seq_len), jnp.float32),
        "bk": 0.1 * jax.random.normal(ks[4], (seq_len,), jnp.float32),
        # nn.Linear(in_dim, in_dim)
        "wv": 0.1 * jax.random.normal(ks[5], (in_dim, in_dim), jnp.float32),
        "bv": 0.1 * jax.random.normal(ks[6], (in_dim,), jnp.float32),
        "wo": 0.1 * jax.random.normal(ks[7], (in_dim, in_dim), jnp.float32),
        "bo": 0.1 * jax.random.normal(ks[8], (in_dim,), jnp.float32),
    }

    prep = prepare_mha_params(params, in_dim, seq_len, num_heads)   # one-time re-layout
    mha = jax.jit(functools.partial(multi_head_attention, num_heads=num_heads))

    out = jax.block_until_ready(mha(x, prep))

    ref = reference(x, params, num_heads)
    assert out.shape == (B, seq_len, in_dim), out.shape
    max_err = float(jnp.max(jnp.abs(out - ref)))
    assert jnp.allclose(out, ref, atol=1e-4, rtol=1e-4), max_err
    print("KERNEL_OK")
</pallas_src>

<mosaic_0001>
module attributes {stable_mosaic.version = 11 : i64} {
  func.func @_mha_kernel(%arg0: i32, %arg1: memref<1x16x32xf32, #tpu.memory_space<vmem>>, %arg2: memref<32x32xf32, #tpu.memory_space<vmem>>, %arg3: memref<1x32xf32, #tpu.memory_space<vmem>>, %arg4: memref<32x32xf32, #tpu.memory_space<vmem>>, %arg5: memref<1x32xf32, #tpu.memory_space<vmem>>, %arg6: memref<1x128x64xf32, #tpu.memory_space<vmem>>, %arg7: memref<32x32xf32, #tpu.memory_space<vmem>>, %arg8: memref<1x32xf32, #tpu.memory_space<vmem>>, %arg9: memref<1x16x32xf32, #tpu.memory_space<vmem>>) attributes {dimension_semantics = [#tpu.dimension_semantics<parallel>], iteration_bounds = array<i64: 2>, scalar_prefetch = 0 : i64, scratch_operands = 0 : i64, tpu.core_type = #tpu.core_type<tc>, window_params = [{transform_indices = @transform_0, window_bounds = array<i64: 1, 16, 32>}, {pipeline_mode = #tpu.pipeline_mode<synchronous>, transform_indices = @transform_1, window_bounds = array<i64: 32, 32>}, {pipeline_mode = #tpu.pipeline_mode<synchronous>, transform_indices = @transform_2, window_bounds = array<i64: 1, 32>}, {pipeline_mode = #tpu.pipeline_mode<synchronous>, transform_indices = @transform_3, window_bounds = array<i64: 32, 32>}, {pipeline_mode = #tpu.pipeline_mode<synchronous>, transform_indices = @transform_4, window_bounds = array<i64: 1, 32>}, {transform_indices = @transform_5, window_bounds = array<i64: 1, 128, 64>}, {pipeline_mode = #tpu.pipeline_mode<synchronous>, transform_indices = @transform_6, window_bounds = array<i64: 32, 32>}, {pipeline_mode = #tpu.pipeline_mode<synchronous>, transform_indices = @transform_7, window_bounds = array<i64: 1, 32>}, {transform_indices = @transform_8, window_bounds = array<i64: 1, 16, 32>}]} {
    %c0 = arith.constant 0 : index
    %c0_0 = arith.constant 0 : index
    %c0_1 = arith.constant 0 : index
    %0 = vector.load %arg1[%c0, %c0_0, %c0_1] : memref<1x16x32xf32, #tpu.memory_space<vmem>>, vector<1x16x32xf32>
    %1 = vector.shape_cast %0 : vector<1x16x32xf32> to vector<16x32xf32>
    %c0_2 = arith.constant 0 : index
    %c0_3 = arith.constant 0 : index
    %c0_4 = arith.constant 0 : index
    %2 = vector.load %arg6[%c0_2, %c0_3, %c0_4] : memref<1x128x64xf32, #tpu.memory_space<vmem>>, vector<1x128x64xf32>
    %3 = vector.shape_cast %2 : vector<1x128x64xf32> to vector<128x64xf32>
    %4 = vector.extract_strided_slice %3 {offsets = [0, 32], sizes = [128, 32], strides = [1, 1]} : vector<128x64xf32> to vector<128x32xf32>
    %c0_5 = arith.constant 0 : index
    %c0_6 = arith.constant 0 : index
    %5 = vector.load %arg2[%c0_5, %c0_6] : memref<32x32xf32, #tpu.memory_space<vmem>>, vector<32x32xf32>
    %cst = arith.constant dense<0.000000e+00> : vector<16x32xf32>
    %6 = tpu.matmul %1, %5, %cst {dimension_numbers = #tpu.dot_dimension_numbers<[1], [0], [0], [1], [0, 0, 1, 1], [], []>} : vector<16x32xf32>, vector<32x32xf32>, vector<16x32xf32> -> vector<16x32xf32>
    %c0_7 = arith.constant 0 : index
    %c0_8 = arith.constant 0 : index
    %7 = vector.load %arg3[%c0_7, %c0_8] : memref<1x32xf32, #tpu.memory_space<vmem>>, vector<1x32xf32>
    %8 = vector.broadcast %7 : vector<1x32xf32> to vector<16x32xf32>
    %9 = arith.addf %6, %8 : vector<16x32xf32>
    %c0_9 = arith.constant 0 : index
    %c0_10 = arith.constant 0 : index
    %10 = vector.load %arg4[%c0_9, %c0_10] : memref<32x32xf32, #tpu.memory_space<vmem>>, vector<32x32xf32>
    %cst_11 = arith.constant dense<0.000000e+00> : vector<16x32xf32>
    %11 = tpu.matmul %1, %10, %cst_11 {dimension_numbers = #tpu.dot_dimension_numbers<[1], [0], [0], [1], [0, 0, 1, 1], [], []>} : vector<16x32xf32>, vector<32x32xf32>, vector<16x32xf32> -> vector<16x32xf32>
    %c0_12 = arith.constant 0 : index
    %c0_13 = arith.constant 0 : index
    %12 = vector.load %arg5[%c0_12, %c0_13] : memref<1x32xf32, #tpu.memory_space<vmem>>, vector<1x32xf32>
    %13 = vector.broadcast %12 : vector<1x32xf32> to vector<16x32xf32>
    %14 = arith.addf %11, %13 : vector<16x32xf32>
    %15 = tpu.concatenate %14, %14, %14, %14, %14, %14, %14, %14 in 0 : vector<16x32xf32>, vector<16x32xf32>, vector<16x32xf32>, vector<16x32xf32>, vector<16x32xf32>, vector<16x32xf32>, vector<16x32xf32>, vector<16x32xf32> -> vector<128x32xf32>
    %16 = arith.mulf %15, %4 : vector<128x32xf32>
    %cst_14 = arith.constant dense<0.000000e+00> : vector<16x128xf32>
    %17 = tpu.matmul %9, %16, %cst_14 {dimension_numbers = #tpu.dot_dimension_numbers<[1], [1], [0], [0], [0, 0, 1, 0], [], []>} : vector<16x32xf32>, vector<128x32xf32>, vector<16x128xf32> -> vector<16x128xf32>
    %cst_15 = arith.constant dense<0xFF800000> : vector<16xf32>
    %18 = vector.multi_reduction <maximumf>, %17, %cst_15 [1] : vector<16x128xf32> to vector<16xf32>
    %19 = vector.shape_cast %18 : vector<16xf32> to vector<16x1xf32>
    %20 = vector.broadcast %19 : vector<16x1xf32> to vector<16x128xf32>
    %21 = arith.subf %17, %20 : vector<16x128xf32>
    %22 = math.exp %21 : vector<16x128xf32>
    %cst_16 = arith.constant dense<0.000000e+00> : vector<16x64xf32>
    %23 = tpu.matmul %22, %3, %cst_16 {dimension_numbers = #tpu.dot_dimension_numbers<[1], [0], [0], [1], [0, 0, 1, 1], [], []>} : vector<16x128xf32>, vector<128x64xf32>, vector<16x64xf32> -> vector<16x64xf32>
    %24 = vector.extract_strided_slice %23 {offsets = [0, 0], sizes = [16, 32], strides = [1, 1]} : vector<16x64xf32> to vector<16x32xf32>
    %25 = vector.extract_strided_slice %23 {offsets = [0, 32], sizes = [16, 32], strides = [1, 1]} : vector<16x64xf32> to vector<16x32xf32>
    %26 = tpu.reciprocal %25 {approx = true} : vector<16x32xf32> -> vector<16x32xf32>
    %27 = arith.mulf %25, %26 : vector<16x32xf32>
    %cst_17 = arith.constant 2.000000e+00 : f32
    %28 = vector.broadcast %cst_17 : f32 to vector<16x32xf32>
    %29 = arith.subf %28, %27 : vector<16x32xf32>
    %30 = arith.mulf %26, %29 : vector<16x32xf32>
    %31 = arith.mulf %24, %30 : vector<16x32xf32>
    %c0_18 = arith.constant 0 : index
    %c0_19 = arith.constant 0 : index
    %32 = vector.load %arg7[%c0_18, %c0_19] : memref<32x32xf32, #tpu.memory_space<vmem>>, vector<32x32xf32>
    %cst_20 = arith.constant dense<0.000000e+00> : vector<16x32xf32>
    %33 = tpu.matmul %31, %32, %cst_20 {dimension_numbers = #tpu.dot_dimension_numbers<[1], [0], [0], [1], [0, 0, 1, 1], [], []>} : vector<16x32xf32>, vector<32x32xf32>, vector<16x32xf32> -> vector<16x32xf32>
    %c0_21 = arith.constant 0 : index
    %c0_22 = arith.constant 0 : index
    %34 = vector.load %arg8[%c0_21, %c0_22] : memref<1x32xf32, #tpu.memory_space<vmem>>, vector<1x32xf32>
    %35 = vector.broadcast %34 : vector<1x32xf32> to vector<16x32xf32>
    %36 = arith.addf %33, %35 : vector<16x32xf32>
    %c0_23 = arith.constant 0 : index
    %c0_24 = arith.constant 0 : index
    %c0_25 = arith.constant 0 : index
    %37 = vector.load %arg9[%c0_23, %c0_24, %c0_25] : memref<1x16x32xf32, #tpu.memory_space<vmem>>, vector<1x16x32xf32>
    %38 = vector.shape_cast %37 : vector<1x16x32xf32> to vector<16x32xf32>
    %39 = vector.shape_cast %36 : vector<16x32xf32> to vector<1x16x32xf32>
    tpu.vector_store %arg9[%c0_23, %c0_24, %c0_25], %39 {strides = array<i32>} : memref<1x16x32xf32, #tpu.memory_space<vmem>>, vector<1x16x32xf32>,
    return
  }
  func.func @transform_0(%arg0: i32) -> (i32, i32, i32) {
    %c0_i32 = arith.constant 0 : i32
    %c0_i32_0 = arith.constant 0 : i32
    %c0_i32_1 = arith.constant 0 : i32
    return %arg0, %c0_i32, %c0_i32_0 : i32, i32, i32
  }
  func.func @transform_1(%arg0: i32) -> (i32, i32) {
    %c0_i32 = arith.constant 0 : i32
    %c0_i32_0 = arith.constant 0 : i32
    %c0_i32_1 = arith.constant 0 : i32
    return %c0_i32, %c0_i32_0 : i32, i32
  }
  func.func @transform_2(%arg0: i32) -> (i32, i32) {
    %c0_i32 = arith.constant 0 : i32
    %c0_i32_0 = arith.constant 0 : i32
    %c0_i32_1 = arith.constant 0 : i32
    return %c0_i32, %c0_i32_0 : i32, i32
  }
  func.func @transform_3(%arg0: i32) -> (i32, i32) {
    %c0_i32 = arith.constant 0 : i32
    %c0_i32_0 = arith.constant 0 : i32
    %c0_i32_1 = arith.constant 0 : i32
    return %c0_i32, %c0_i32_0 : i32, i32
  }
  func.func @transform_4(%arg0: i32) -> (i32, i32) {
    %c0_i32 = arith.constant 0 : i32
    %c0_i32_0 = arith.constant 0 : i32
    %c0_i32_1 = arith.constant 0 : i32
    return %c0_i32, %c0_i32_0 : i32, i32
  }
  func.func @transform_5(%arg0: i32) -> (i32, i32, i32) {
    %c0_i32 = arith.constant 0 : i32
    %c0_i32_0 = arith.constant 0 : i32
    %c0_i32_1 = arith.constant 0 : i32
    return %arg0, %c0_i32, %c0_i32_0 : i32, i32, i32
  }
  func.func @transform_6(%arg0: i32) -> (i32, i32) {
    %c0_i32 = arith.constant 0 : i32
    %c0_i32_0 = arith.constant 0 : i32
    %c0_i32_1 = arith.constant 0 : i32
    return %c0_i32, %c0_i32_0 : i32, i32
  }
  func.func @transform_7(%arg0: i32) -> (i32, i32) {
    %c0_i32 = arith.constant 0 : i32
    %c0_i32_0 = arith.constant 0 : i32
    %c0_i32_1 = arith.constant 0 : i32
    return %c0_i32, %c0_i32_0 : i32, i32
  }
  func.func @transform_8(%arg0: i32) -> (i32, i32, i32) {
    %c0_i32 = arith.constant 0 : i32
    %c0_i32_0 = arith.constant 0 : i32
    %c0_i32_1 = arith.constant 0 : i32
    return %arg0, %c0_i32, %c0_i32_0 : i32, i32, i32
  }
}

</mosaic_0001>

<llo_original>
// kernel: mul.8
$region0: #{mul.8}
  %s0 = inlined_call_operand.vmem [shape: f32[2,16,32], index: 0, kind: input, shape index: {}]
  %s1 = inlined_call_operand.vmem [shape: f32[2,8,16,4], index: 1, kind: output, shape index: {}]
  %v2 = vld [vmem:[%s0] sm:$0xff]
  %vm3 = vcmask 31744
  %4 = vst.msk [vmem:[%s1] ss:$8 sm:$0xf] %vm3, %v2
  %5 = vst.msk [vmem:[%s1] ss:$8 sm:$0xf0] %vm3, %v2
  %s6 = scalar_lea.vmem %s0, 8
  %v7 = vld [vmem:[%s6] sm:$0xff]
  %vm8 = vcmask 31744
  %s9 = scalar_lea.vmem %s1, 64
  %10 = vst.msk [vmem:[%s9] ss:$8 sm:$0xf] %vm8, %v7
  %s11 = scalar_lea.vmem %s1, 64
  %12 = vst.msk [vmem:[%s11] ss:$8 sm:$0xf0] %vm8, %v7
  %s13 = scalar_lea.vmem %s0, 16
  %v14 = vld [vmem:[%s13] sm:$0xff]
  %vm15 = vcmask 31744
  %s16 = scalar_lea.vmem %s1, 128
  %17 = vst.msk [vmem:[%s16] ss:$8 sm:$0xf] %vm15, %v14
  %s18 = scalar_lea.vmem %s1, 128
  %19 = vst.msk [vmem:[%s18] ss:$8 sm:$0xf0] %vm15, %v14
  %s20 = scalar_lea.vmem %s0, 24
  %v21 = vld [vmem:[%s20] sm:$0xff]
  %vm22 = vcmask 31744
  %s23 = scalar_lea.vmem %s1, 192
  %24 = vst.msk [vmem:[%s23] ss:$8 sm:$0xf] %vm22, %v21
  %s25 = scalar_lea.vmem %s1, 192
  %26 = vst.msk [vmem:[%s25] ss:$8 sm:$0xf0] %vm22, %v21
  %v27 = vld [vmem:[%s0] sm:$0xff]
  %28 = vrot.lane.b32.xlu0 %v27, 124
  %v29 = vpop.permute.xlu0 %28
  %vm30 = vcmask 31744
  %s31 = scalar_lea.vmem %s1, 1
  %32 = vst.msk [vmem:[%s31] ss:$8 sm:$0xf] %vm30, %v29
  %s33 = scalar_lea.vmem %s1, 1
  %34 = vst.msk [vmem:[%s33] ss:$8 sm:$0xf0] %vm30, %v29
  %s35 = scalar_lea.vmem %s0, 8
  %v36 = vld [vmem:[%s35] sm:$0xff]
  %37 = vrot.lane.b32.xlu0 %v36, 124
  %v38 = vpop.permute.xlu0 %37
  %vm39 = vcmask 31744
  %s40 = scalar_lea.vmem %s1, 65
  %41 = vst.msk [vmem:[%s40] ss:$8 sm:$0xf] %vm39, %v38
  %s42 = scalar_lea.vmem %s1, 65
  %43 = vst.msk [vmem:[%s42] ss:$8 sm:$0xf0] %vm39, %v38
  %s44 = scalar_lea.vmem %s0, 16
  %v45 = vld [vmem:[%s44] sm:$0xff]
  %46 = vrot.lane.b32.xlu0 %v45, 124
  %v47 = vpop.permute.xlu0 %46
  %vm48 = vcmask 31744
  %s49 = scalar_lea.vmem %s1, 129
  %50 = vst.msk [vmem:[%s49] ss:$8 sm:$0xf] %vm48, %v47
  %s51 = scalar_lea.vmem %s1, 129
  %52 = vst.msk [vmem:[%s51] ss:$8 sm:$0xf0] %vm48, %v47
  %s53 = scalar_lea.vmem %s0, 24
  %v54 = vld [vmem:[%s53] sm:$0xff]
  %55 = vrot.lane.b32.xlu0 %v54, 124
  %v56 = vpop.permute.xlu0 %55
  %vm57 = vcmask 31744
  %s58 = scalar_lea.vmem %s1, 193
  %59 = vst.msk [vmem:[%s58] ss:$8 sm:$0xf] %vm57, %v56
  %s60 = scalar_lea.vmem %s1, 193
  %61 = vst.msk [vmem:[%s60] ss:$8 sm:$0xf0] %vm57, %v56
  %v62 = vld [vmem:[%s0] sm:$0xff]
  %63 = vrot.lane.b32.xlu0 %v62, 120
  %v64 = vpop.permute.xlu0 %63
  %vm65 = vcmask 31744
  %s66 = scalar_lea.vmem %s1, 2
  %67 = vst.msk [vmem:[%s66] ss:$8 sm:$0xf] %vm65, %v64
  %s68 = scalar_lea.vmem %s1, 2
  %69 = vst.msk [vmem:[%s68] ss:$8 sm:$0xf0] %vm65, %v64
  %s70 = scalar_lea.vmem %s0, 8
  %v71 = vld [vmem:[%s70] sm:$0xff]
  %72 = vrot.lane.b32.xlu0 %v71, 120
  %v73 = vpop.permute.xlu0 %72
  %vm74 = vcmask 31744
  %s75 = scalar_lea.vmem %s1, 66
  %76 = vst.msk [vmem:[%s75] ss:$8 sm:$0xf] %vm74, %v73
  %s77 = scalar_lea.vmem %s1, 66
  %78 = vst.msk [vmem:[%s77] ss:$8 sm:$0xf0] %vm74, %v73
  %s79 = scalar_lea.vmem %s0, 16
  %v80 = vld [vmem:[%s79] sm:$0xff]
  %81 = vrot.lane.b32.xlu0 %v80, 120
  %v82 = vpop.permute.xlu0 %81
  %vm83 = vcmask 31744
  %s84 = scalar_lea.vmem %s1, 130
  %85 = vst.msk [vmem:[%s84] ss:$8 sm:$0xf] %vm83, %v82
  %s86 = scalar_lea.vmem %s1, 130
  %87 = vst.msk [vmem:[%s86] ss:$8 sm:$0xf0] %vm83, %v82
  %s88 = scalar_lea.vmem %s0, 24
  %v89 = vld [vmem:[%s88] sm:$0xff]
  %90 = vrot.lane.b32.xlu0 %v89, 120
  %v91 = vpop.permute.xlu0 %90
  %vm92 = vcmask 31744
  %s93 = scalar_lea.vmem %s1, 194
  %94 = vst.msk [vmem:[%s93] ss:$8 sm:$0xf] %vm92, %v91
  %s95 = scalar_lea.vmem %s1, 194
  %96 = vst.msk [vmem:[%s95] ss:$8 sm:$0xf0] %vm92, %v91
  %v97 = vld [vmem:[%s0] sm:$0xff]
  %98 = vrot.lane.b32.xlu0 %v97, 116
  %v99 = vpop.permute.xlu0 %98
  %vm100 = vcmask 31744
  %s101 = scalar_lea.vmem %s1, 3
  %102 = vst.msk [vmem:[%s101] ss:$8 sm:$0xf] %vm100, %v99
  %s103 = scalar_lea.vmem %s1, 3
  %104 = vst.msk [vmem:[%s103] ss:$8 sm:$0xf0] %vm100, %v99
  %s105 = scalar_lea.vmem %s0, 8
  %v106 = vld [vmem:[%s105] sm:$0xff]
  %107 = vrot.lane.b32.xlu0 %v106, 116
  %v108 = vpop.permute.xlu0 %107
  %vm109 = vcmask 31744
  %s110 = scalar_lea.vmem %s1, 67
  %111 = vst.msk [vmem:[%s110] ss:$8 sm:$0xf] %vm109, %v108
  %s112 = scalar_lea.vmem %s1, 67
  %113 = vst.msk [vmem:[%s112] ss:$8 sm:$0xf0] %vm109, %v108
  %s114 = scalar_lea.vmem %s0, 16
  %v115 = vld [vmem:[%s114] sm:$0xff]
  %116 = vrot.lane.b32.xlu0 %v115, 116
  %v117 = vpop.permute.xlu0 %116
  %vm118 = vcmask 31744
  %s119 = scalar_lea.vmem %s1, 131
  %120 = vst.msk [vmem:[%s119] ss:$8 sm:$0xf] %vm118, %v117
  %s121 = scalar_lea.vmem %s1, 131
  %122 = vst.msk [vmem:[%s121] ss:$8 sm:$0xf0] %vm118, %v117
  %s123 = scalar_lea.vmem %s0, 24
  %v124 = vld [vmem:[%s123] sm:$0xff]
  %125 = vrot.lane.b32.xlu0 %v124, 116
  %v126 = vpop.permute.xlu0 %125
  %vm127 = vcmask 31744
  %s128 = scalar_lea.vmem %s1, 195
  %129 = vst.msk [vmem:[%s128] ss:$8 sm:$0xf] %vm127, %v126
  %s130 = scalar_lea.vmem %s1, 195
  %131 = vst.msk [vmem:[%s130] ss:$8 sm:$0xf0] %vm127, %v126
  %v132 = vld [vmem:[%s0] sm:$0xff]
  %133 = vrot.lane.b32.xlu0 %v132, 112
  %v134 = vpop.permute.xlu0 %133
  %vm135 = vcmask 31744
  %s136 = scalar_lea.vmem %s1, 4
  %137 = vst.msk [vmem:[%s136] ss:$8 sm:$0xf] %vm135, %v134
  %s138 = scalar_lea.vmem %s1, 4
  %139 = vst.msk [vmem:[%s138] ss:$8 sm:$0xf0] %vm135, %v134
  %s140 = scalar_lea.vmem %s0, 8
  %v141 = vld [vmem:[%s140] sm:$0xff]
  %142 = vrot.lane.b32.xlu0 %v141, 112
  %v143 = vpop.permute.xlu0 %142
  %vm144 = vcmask 31744
  %s145 = scalar_lea.vmem %s1, 68
  %146 = vst.msk [vmem:[%s145] ss:$8 sm:$0xf] %vm144, %v143
  %s147 = scalar_lea.vmem %s1, 68
  %148 = vst.msk [vmem:[%s147] ss:$8 sm:$0xf0] %vm144, %v143
  %s149 = scalar_lea.vmem %s0, 16
  %v150 = vld [vmem:[%s149] sm:$0xff]
  %151 = vrot.lane.b32.xlu0 %v150, 112
  %v152 = vpop.permute.xlu0 %151
  %vm153 = vcmask 31744
  %s154 = scalar_lea.vmem %s1, 132
  %155 = vst.msk [vmem:[%s154] ss:$8 sm:$0xf] %vm153, %v152
  %s156 = scalar_lea.vmem %s1, 132
  %157 = vst.msk [vmem:[%s156] ss:$8 sm:$0xf0] %vm153, %v152
  %s158 = scalar_lea.vmem %s0, 24
  %v159 = vld [vmem:[%s158] sm:$0xff]
  %160 = vrot.lane.b32.xlu0 %v159, 112
  %v161 = vpop.permute.xlu0 %160
  %vm162 = vcmask 31744
  %s163 = scalar_lea.vmem %s1, 196
  %164 = vst.msk [vmem:[%s163] ss:$8 sm:$0xf] %vm162, %v161
  %s165 = scalar_lea.vmem %s1, 196
  %166 = vst.msk [vmem:[%s165] ss:$8 sm:$0xf0] %vm162, %v161
  %v167 = vld [vmem:[%s0] sm:$0xff]
  %168 = vrot.lane.b32.xlu0 %v167, 108
  %v169 = vpop.permute.xlu0 %168
  %vm170 = vcmask 31744
  %s171 = scalar_lea.vmem %s1, 5
  %172 = vst.msk [vmem:[%s171] ss:$8 sm:$0xf] %vm170, %v169
  %s173 = scalar_lea.vmem %s1, 5
  %174 = vst.msk [vmem:[%s173] ss:$8 sm:$0xf0] %vm170, %v169
  %s175 = scalar_lea.vmem %s0, 8
  %v176 = vld [vmem:[%s175] sm:$0xff]
  %177 = vrot.lane.b32.xlu0 %v176, 108
  %v178 = vpop.permute.xlu0 %177
  %vm179 = vcmask 31744
  %s180 = scalar_lea.vmem %s1, 69
  %181 = vst.msk [vmem:[%s180] ss:$8 sm:$0xf] %vm179, %v178
  %s182 = scalar_lea.vmem %s1, 69
  %183 = vst.msk [vmem:[%s182] ss:$8 sm:$0xf0] %vm179, %v178
  %s184 = scalar_lea.vmem %s0, 16
  %v185 = vld [vmem:[%s184] sm:$0xff]
  %186 = vrot.lane.b32.xlu0 %v185, 108
  %v187 = vpop.permute.xlu0 %186
  %vm188 = vcmask 31744
  %s189 = scalar_lea.vmem %s1, 133
  %190 = vst.msk [vmem:[%s189] ss:$8 sm:$0xf] %vm188, %v187
  %s191 = scalar_lea.vmem %s1, 133
  %192 = vst.msk [vmem:[%s191] ss:$8 sm:$0xf0] %vm188, %v187
  %s193 = scalar_lea.vmem %s0, 24
  %v194 = vld [vmem:[%s193] sm:$0xff]
  %195 = vrot.lane.b32.xlu0 %v194, 108
  %v196 = vpop.permute.xlu0 %195
  %vm197 = vcmask 31744
  %s198 = scalar_lea.vmem %s1, 197
  %199 = vst.msk [vmem:[%s198] ss:$8 sm:$0xf] %vm197, %v196
  %s200 = scalar_lea.vmem %s1, 197
  %201 = vst.msk [vmem:[%s200] ss:$8 sm:$0xf0] %vm197, %v196
  %v202 = vld [vmem:[%s0] sm:$0xff]
  %203 = vrot.lane.b32.xlu0 %v202, 104
  %v204 = vpop.permute.xlu0 %203
  %vm205 = vcmask 31744
  %s206 = scalar_lea.vmem %s1, 6
  %207 = vst.msk [vmem:[%s206] ss:$8 sm:$0xf] %vm205, %v204
  %s208 = scalar_lea.vmem %s1, 6
  %209 = vst.msk [vmem:[%s208] ss:$8 sm:$0xf0] %vm205, %v204
  %s210 = scalar_lea.vmem %s0, 8
  %v211 = vld [vmem:[%s210] sm:$0xff]
  %212 = vrot.lane.b32.xlu0 %v211, 104
  %v213 = vpop.permute.xlu0 %212
  %vm214 = vcmask 31744
  %s215 = scalar_lea.vmem %s1, 70
  %216 = vst.msk [vmem:[%s215] ss:$8 sm:$0xf] %vm214, %v213
  %s217 = scalar_lea.vmem %s1, 70
  %218 = vst.msk [vmem:[%s217] ss:$8 sm:$0xf0] %vm214, %v213
  %s219 = scalar_lea.vmem %s0, 16
  %v220 = vld [vmem:[%s219] sm:$0xff]
  %221 = vrot.lane.b32.xlu0 %v220, 104
  %v222 = vpop.permute.xlu0 %221
  %vm223 = vcmask 31744
  %s224 = scalar_lea.vmem %s1, 134
  %225 = vst.msk [vmem:[%s224] ss:$8 sm:$0xf] %vm223, %v222
  %s226 = scalar_lea.vmem %s1, 134
  %227 = vst.msk [vmem:[%s226] ss:$8 sm:$0xf0] %vm223, %v222
  %s228 = scalar_lea.vmem %s0, 24
  %v229 = vld [vmem:[%s228] sm:$0xff]
  %230 = vrot.lane.b32.xlu0 %v229, 104
  %v231 = vpop.permute.xlu0 %230
  %vm232 = vcmask 31744
  %s233 = scalar_lea.vmem %s1, 198
  %234 = vst.msk [vmem:[%s233] ss:$8 sm:$0xf] %vm232, %v231
  %s235 = scalar_lea.vmem %s1, 198
  %236 = vst.msk [vmem:[%s235] ss:$8 sm:$0xf0] %vm232, %v231
  %v237 = vld [vmem:[%s0] sm:$0xff]
  %238 = vrot.lane.b32.xlu0 %v237, 100
  %v239 = vpop.permute.xlu0 %238
  %vm240 = vcmask 31744
  %s241 = scalar_lea.vmem %s1, 7
  %242 = vst.msk [vmem:[%s241] ss:$8 sm:$0xf] %vm240, %v239
  %s243 = scalar_lea.vmem %s1, 7
  %244 = vst.msk [vmem:[%s243] ss:$8 sm:$0xf0] %vm240, %v239
  %s245 = scalar_lea.vmem %s0, 8
  %v246 = vld [vmem:[%s245] sm:$0xff]
  %247 = vrot.lane.b32.xlu0 %v246, 100
  %v248 = vpop.permute.xlu0 %247
  %vm249 = vcmask 31744
  %s250 = scalar_lea.vmem %s1, 71
  %251 = vst.msk [vmem:[%s250] ss:$8 sm:$0xf] %vm249, %v248
  %s252 = scalar_lea.vmem %s1, 71
  %253 = vst.msk [vmem:[%s252] ss:$8 sm:$0xf0] %vm249, %v248
  %s254 = scalar_lea.vmem %s0, 16
  %v255 = vld [vmem:[%s254] sm:$0xff]
  %256 = vrot.lane.b32.xlu0 %v255, 100
  %v257 = vpop.permute.xlu0 %256
  %vm258 = vcmask 31744
  %s259 = scalar_lea.vmem %s1, 135
  %260 = vst.msk [vmem:[%s259] ss:$8 sm:$0xf] %vm258, %v257
  %s261 = scalar_lea.vmem %s1, 135
  %262 = vst.msk [vmem:[%s261] ss:$8 sm:$0xf0] %vm258, %v257
  %s263 = scalar_lea.vmem %s0, 24
  %v264 = vld [vmem:[%s263] sm:$0xff]
  %265 = vrot.lane.b32.xlu0 %v264, 100
  %v266 = vpop.permute.xlu0 %265
  %vm267 = vcmask 31744
  %s268 = scalar_lea.vmem %s1, 199
  %269 = vst.msk [vmem:[%s268] ss:$8 sm:$0xf] %vm267, %v266
  %s270 = scalar_lea.vmem %s1, 199
  %271 = vst.msk [vmem:[%s270] ss:$8 sm:$0xf0] %vm267, %v266

// kernel: multi_head_attention.1
$region0: #{multi_head_attention.1}
  #allocation0 [shape = 'u32[]', space=smem, size = 0x4, offset = 0x4, fixed_abs, tag = 'smem constant byte address 0x4 - core index']
  #allocation1 [shape = 'u32[72,128]{1,0:T(1,128)}', space=vmem, size = 0x9000, scoped, tag = 'internal scratch']
  %s0 = inlined_call_operand.vmem [shape: f32[2,16,32], index: 0, kind: input, shape index: {}]
  %s1 = inlined_call_operand.vmem [shape: f32[32,32], index: 1, kind: input, shape index: {}]
  %s2 = inlined_call_operand.vmem [shape: f32[1,32], index: 2, kind: input, shape index: {}]
  %s3 = inlined_call_operand.vmem [shape: f32[32,32], index: 3, kind: input, shape index: {}]
  %s4 = inlined_call_operand.vmem [shape: f32[1,32], index: 4, kind: input, shape index: {}]
  %s5 = inlined_call_operand.vmem [shape: f32[2,128,64], index: 5, kind: input, shape index: {}]
  %s6 = inlined_call_operand.vmem [shape: f32[32,32], index: 6, kind: input, shape index: {}]
  %s7 = inlined_call_operand.vmem [shape: f32[1,32], index: 7, kind: input, shape index: {}]
  %s8 = inlined_call_operand.hbm [shape: f32[2,16,32], index: 8, kind: output, shape index: {}]
  %s9 = sld [smem:[#allocation0]]
  $region65: #{multi_head_attention.1} parent=0
    _
  %s11 = ssub.s32 1, %s9
  %s12 = scalar_select 0, %s11, %s9
  $region1: #{multi_head_attention.1} parent=0
    #allocation2 [shape = 'u8[16384]{0}', space=vmem, size = 0x4000, scoped, tag = 'output window, operand 0']
    #allocation3 [shape = 's32[2]{0}', space=sflag, size = 0x8, scoped, tag = 'scoped memory for multi_head_attention.1']
    %13 = vsyncpa [#allocation3], 0
    %s14 = scalar_lea.sflag [#allocation3], 1
    %15 = vsyncpa %s14, 0
    loop: start=0, step=1, limit=4
    $region2: #{multi_head_attention.1} parent=1 // loop_pre_header
      _
    $region3: #{multi_head_attention.1} parent=1 // loop_header
      %s17 = sphi 0, %s21
      %p18 = scmp.ge.s32.totalorder %s17, 4
      %s27 = sphi 0, %s29
      %s30 = sphi 0, %s27
      %s31 = sphi 0, %s30
      %s47 = sphi 0, %s31
      %s51 = sphi 0, %s51
      %s53 = sphi 0, %s51
      %s54 = sphi 0, %s53
      %s68 = sphi 0, %s54
      %s72 = sphi 0, %s72
      %s74 = sphi 0, %s72
      %s75 = sphi 0, %s74
      %s89 = sphi 0, %s75
      %s93 = sphi 0, %s93
      %s95 = sphi 0, %s93
      %s96 = sphi 0, %s95
      %s110 = sphi 0, %s96
      %s114 = sphi 0, %s114
      %s116 = sphi 0, %s114
      %s117 = sphi 0, %s116
      %s131 = sphi 0, %s117
      %s137 = sphi 0, %s139
      %s140 = sphi 0, %s137
      %s141 = sphi 0, %s140
      %s157 = sphi 0, %s141
      %s161 = sphi 0, %s161
      %s163 = sphi 0, %s161
      %s164 = sphi 0, %s163
      %s178 = sphi 0, %s164
      %s182 = sphi 0, %s182
      %s184 = sphi 0, %s182
      %s185 = sphi 0, %s184
      %s199 = sphi 0, %s185
      %s205 = sphi 0, %s207
      %s208 = sphi 0, %s205
      %s209 = sphi 0, %s208
      %s225 = sphi 0, %s209
    $region4: #{multi_head_attention.1} parent=1 // loop_header_branch
      %20 = sbr.rel (%p18) target = $region8
    $region5: #{multi_head_attention.1} parent=1 // loop_body
      %s22 = ssub.s32 %s17, 1
      %s23 = ssub.s32 %s17, 2
      %s24 = sadd.s32 %s17, 1
      %s25 = ssub.s32 %s17, %s24
      %p26 = scmp.eq.s32.totalorder %s25, 0
      %s28 = sadd.s32 %s27, 1
      %s29 = scalar_select %p26, %s27, %s28
      %p32 = pneg %p26
      %p33 = scmp.eq.s32.totalorder %s17, 1
      %p34 = por %p32, %p33
      %p35 = scmp.ne.s32.totalorder %s27, %s30
      %p36 = scmp.eq.s32.totalorder %s17, 0
      %p37 = por %p35, %p36
      %p38 = scmp.ne.s32.totalorder %s27, %s30
      %p39 = scmp.eq.s32.totalorder %s22, 1
      %p40 = por %p38, %p39
      %p41 = scmp.ne.s32.totalorder %s30, %s31
      %p42 = scmp.eq.s32.totalorder %s22, 0
      %p43 = por %p41, %p42
      %p44 = scmp.ne.s32.totalorder %s30, %s31
      %p45 = scmp.eq.s32.totalorder %s23, 1
      %p46 = por %p44, %p45
      %p48 = scmp.ne.s32.totalorder %s31, %s47
      %p49 = scmp.eq.s32.totalorder %s23, 0
      %p50 = por %p48, %p49
      %s52 = sadd.s32 %s51, 1
      %p55 = scmp.eq.s32.totalorder %s17, 1
      %p56 = scmp.ne.s32.totalorder %s51, %s53
      %p57 = scmp.eq.s32.totalorder %s17, 0
      %p58 = por %p56, %p57
      %p59 = scmp.ne.s32.totalorder %s51, %s53
      %p60 = scmp.eq.s32.totalorder %s22, 1
      %p61 = por %p59, %p60
      %p62 = scmp.ne.s32.totalorder %s53, %s54
      %p63 = scmp.eq.s32.totalorder %s22, 0
      %p64 = por %p62, %p63
      %p65 = scmp.ne.s32.totalorder %s53, %s54
      %p66 = scmp.eq.s32.totalorder %s23, 1
      %p67 = por %p65, %p66
      %p69 = scmp.ne.s32.totalorder %s54, %s68
      %p70 = scmp.eq.s32.totalorder %s23, 0
      %p71 = por %p69, %p70
      %s73 = sadd.s32 %s72, 1
      %p76 = scmp.eq.s32.totalorder %s17, 1
      %p77 = scmp.ne.s32.totalorder %s72, %s74
      %p78 = scmp.eq.s32.totalorder %s17, 0
      %p79 = por %p77, %p78
      %p80 = scmp.ne.s32.totalorder %s72, %s74
      %p81 = scmp.eq.s32.totalorder %s22, 1
      %p82 = por %p80, %p81
      %p83 = scmp.ne.s32.totalorder %s74, %s75
      %p84 = scmp.eq.s32.totalorder %s22, 0
      %p85 = por %p83, %p84
      %p86 = scmp.ne.s32.totalorder %s74, %s75
      %p87 = scmp.eq.s32.totalorder %s23, 1
      %p88 = por %p86, %p87
      %p90 = scmp.ne.s32.totalorder %s75, %s89
      %p91 = scmp.eq.s32.totalorder %s23, 0
      %p92 = por %p90, %p91
      %s94 = sadd.s32 %s93, 1
      %p97 = scmp.eq.s32.totalorder %s17, 1
      %p98 = scmp.ne.s32.totalorder %s93, %s95
      %p99 = scmp.eq.s32.totalorder %s17, 0
      %p100 = por %p98, %p99
      %p101 = scmp.ne.s32.totalorder %s93, %s95
      %p102 = scmp.eq.s32.totalorder %s22, 1
      %p103 = por %p101, %p102
      %p104 = scmp.ne.s32.totalorder %s95, %s96
      %p105 = scmp.eq.s32.totalorder %s22, 0
      %p106 = por %p104, %p105
      %p107 = scmp.ne.s32.totalorder %s95, %s96
      %p108 = scmp.eq.s32.totalorder %s23, 1
      %p109 = por %p107, %p108
      %p111 = scmp.ne.s32.totalorder %s96, %s110
      %p112 = scmp.eq.s32.totalorder %s23, 0
      %p113 = por %p111, %p112
      %s115 = sadd.s32 %s114, 1
      %p118 = scmp.eq.s32.totalorder %s17, 1
      %p119 = scmp.ne.s32.totalorder %s114, %s116
      %p120 = scmp.eq.s32.totalorder %s17, 0
      %p121 = por %p119, %p120
      %p122 = scmp.ne.s32.totalorder %s114, %s116
      %p123 = scmp.eq.s32.totalorder %s22, 1
      %p124 = por %p122, %p123
      %p125 = scmp.ne.s32.totalorder %s116, %s117
      %p126 = scmp.eq.s32.totalorder %s22, 0
      %p127 = por %p125, %p126
      %p128 = scmp.ne.s32.totalorder %s116, %s117
      %p129 = scmp.eq.s32.totalorder %s23, 1
      %p130 = por %p128, %p129
      %p132 = scmp.ne.s32.totalorder %s117, %s131
      %p133 = scmp.eq.s32.totalorder %s23, 0
      %p134 = por %p132, %p133
      %s135 = ssub.s32 %s17, %s24
      %p136 = scmp.eq.s32.totalorder %s135, 0
      %s138 = sadd.s32 %s137, 1
      %s139 = scalar_select %p136, %s137, %s138
      %p142 = pneg %p136
      %p143 = scmp.eq.s32.totalorder %s17, 1
      %p144 = por %p142, %p143
      %p145 = scmp.ne.s32.totalorder %s137, %s140
      %p146 = scmp.eq.s32.totalorder %s17, 0
      %p147 = por %p145, %p146
      %p148 = scmp.ne.s32.totalorder %s137, %s140
      %p149 = scmp.eq.s32.totalorder %s22, 1
      %p150 = por %p148, %p149
      %p151 = scmp.ne.s32.totalorder %s140, %s141
      %p152 = scmp.eq.s32.totalorder %s22, 0
      %p153 = por %p151, %p152
      %p154 = scmp.ne.s32.totalorder %s140, %s141
      %p155 = scmp.eq.s32.totalorder %s23, 1
      %p156 = por %p154, %p155
      %p158 = scmp.ne.s32.totalorder %s141, %s157
      %p159 = scmp.eq.s32.totalorder %s23, 0
      %p160 = por %p158, %p159
      %s162 = sadd.s32 %s161, 1
      %p165 = scmp.eq.s32.totalorder %s17, 1
      %p166 = scmp.ne.s32.totalorder %s161, %s163
      %p167 = scmp.eq.s32.totalorder %s17, 0
      %p168 = por %p166, %p167
      %p169 = scmp.ne.s32.totalorder %s161, %s163
      %p170 = scmp.eq.s32.totalorder %s22, 1
      %p171 = por %p169, %p170
      %p172 = scmp.ne.s32.totalorder %s163, %s164
      %p173 = scmp.eq.s32.totalorder %s22, 0
      %p174 = por %p172, %p173
      %p175 = scmp.ne.s32.totalorder %s163, %s164
      %p176 = scmp.eq.s32.totalorder %s23, 1
      %p177 = por %p175, %p176
      %p179 = scmp.ne.s32.totalorder %s164, %s178
      %p180 = scmp.eq.s32.totalorder %s23, 0
      %p181 = por %p179, %p180
      %s183 = sadd.s32 %s182, 1
      %p186 = scmp.eq.s32.totalorder %s17, 1
      %p187 = scmp.ne.s32.totalorder %s182, %s184
      %p188 = scmp.eq.s32.totalorder %s17, 0
      %p189 = por %p187, %p188
      %p190 = scmp.ne.s32.totalorder %s182, %s184
      %p191 = scmp.eq.s32.totalorder %s22, 1
      %p192 = por %p190, %p191
      %p193 = scmp.ne.s32.totalorder %s184, %s185
      %p194 = scmp.eq.s32.totalorder %s22, 0
      %p195 = por %p193, %p194
      %p196 = scmp.ne.s32.totalorder %s184, %s185
      %p197 = scmp.eq.s32.totalorder %s23, 1
      %p198 = por %p196, %p197
      %p200 = scmp.ne.s32.totalorder %s185, %s199
      %p201 = scmp.eq.s32.totalorder %s23, 0
      %p202 = por %p200, %p201
      %s203 = ssub.s32 %s17, %s24
      %p204 = scmp.eq.s32.totalorder %s203, 0
      %s206 = sadd.s32 %s205, 1
      %s207 = scalar_select %p204, %s205, %s206
      %p210 = pneg %p204
      %p211 = scmp.eq.s32.totalorder %s17, 1
      %p212 = por %p210, %p211
      %p213 = scmp.ne.s32.totalorder %s205, %s208
      %p214 = scmp.eq.s32.totalorder %s17, 0
      %p215 = por %p213, %p214
      %p216 = scmp.ne.s32.totalorder %s205, %s208
      %p217 = scmp.eq.s32.totalorder %s22, 1
      %p218 = por %p216, %p217
      %p219 = scmp.ne.s32.totalorder %s208, %s209
      %p220 = scmp.eq.s32.totalorder %s22, 0
      %p221 = por %p219, %p220
      %p222 = scmp.ne.s32.totalorder %s208, %s209
      %p223 = scmp.eq.s32.totalorder %s23, 1
      %p224 = por %p222, %p223
      %p226 = scmp.ne.s32.totalorder %s209, %s225
      %p227 = scmp.eq.s32.totalorder %s23, 0
      %p228 = por %p226, %p227
      %p229 = scmp.le.s32.totalorder 1, %s17
      %p230 = scmp.lt.s32.totalorder %s17, 3
      %p231 = pnand %p229, %p230
      %p232 = pneg %p231
      // Predicated region
      $region9: #{multi_head_attention.1} parent=5 // pred_check
        _
      $region10: #{multi_head_attention.1} parent=5 // pred_check_branch
        %234 = sbr.rel (%p231) target = $region12
      $region11: #{multi_head_attention.1} parent=5 // pred_region
        %s235 = ssub.s32 %s17, 1
        // Predicated region
        $region13: #{multi_head_attention.1} parent=11 // pred_check
          %p236 = pneg %p64
        $region14: #{multi_head_attention.1} parent=11 // pred_check_branch
          %238 = sbr.rel (%p236) target = $region16
        $region15: #{multi_head_attention.1} parent=11 // pred_region
          _
        $region16: #{multi_head_attention.1} parent=11 // pred_fallthru
          _
        // Predicated region
        $region17: #{multi_head_attention.1} parent=11 // pred_check
          %p239 = pneg %p85
        $region18: #{multi_head_attention.1} parent=11 // pred_check_branch
          %241 = sbr.rel (%p239) target = $region20
        $region19: #{multi_head_attention.1} parent=11 // pred_region
          _
        $region20: #{multi_head_attention.1} parent=11 // pred_fallthru
          _
        // Predicated region
        $region21: #{multi_head_attention.1} parent=11 // pred_check
          %p242 = pneg %p106
        $region22: #{multi_head_attention.1} parent=11 // pred_check_branch
          %244 = sbr.rel (%p242) target = $region24
        $region23: #{multi_head_attention.1} parent=11 // pred_region
          _
        $region24: #{multi_head_attention.1} parent=11 // pred_fallthru
          _
        // Predicated region
        $region25: #{multi_head_attention.1} parent=11 // pred_check
          %p245 = pneg %p127
        $region26: #{multi_head_attention.1} parent=11 // pred_check_branch
          %247 = sbr.rel (%p245) target = $region28
        $region27: #{multi_head_attention.1} parent=11 // pred_region
          _
        $region28: #{multi_head_attention.1} parent=11 // pred_fallthru
          _
        // Predicated region
        $region29: #{multi_head_attention.1} parent=11 // pred_check
          %p248 = pneg %p174
        $region30: #{multi_head_attention.1} parent=11 // pred_check_branch
          %250 = sbr.rel (%p248) target = $region32
        $region31: #{multi_head_attention.1} parent=11 // pred_region
          _
        $region32: #{multi_head_attention.1} parent=11 // pred_fallthru
          _
        // Predicated region
        $region33: #{multi_head_attention.1} parent=11 // pred_check
          %p251 = pneg %p195
        $region34: #{multi_head_attention.1} parent=11 // pred_check_branch
          %253 = sbr.rel (%p251) target = $region36
        $region35: #{multi_head_attention.1} parent=11 // pred_region
          _
        $region36: #{multi_head_attention.1} parent=11 // pred_fallthru
          _
      $region12: #{multi_head_attention.1} parent=5 // pred_fallthru
        _
      %p254 = scmp.lt.s32.totalorder %s17, 2
      // Predicated region
      $region37: #{multi_head_attention.1} parent=5 // pred_check
        %p255 = pneg %p254
      $region38: #{multi_head_attention.1} parent=5 // pred_check_branch
        %257 = sbr.rel (%p255) target = $region40
      $region39: #{multi_head_attention.1} parent=5 // pred_region
        // Predicated region
        $region41: #{multi_head_attention.1} parent=39 // pred_check
          %p258 = pneg %p37
        $region42: #{multi_head_attention.1} parent=39 // pred_check_branch
          %260 = sbr.rel (%p258) target = $region44
        $region43: #{multi_head_attention.1} parent=39 // pred_region
          %p261 = scmp.lt.s32.totalorder %s17, 1
          %s262 = scalar_select %p261, %s17, 1
          %s263 = smul.addr %s262, 2
          %s264 = smul.addr %s263, 8
          %s265 = scalar_lea.vmem %s0, %s264
        $region44: #{multi_head_attention.1} parent=39 // pred_fallthru
          _
        // Predicated region
        $region45: #{multi_head_attention.1} parent=39 // pred_check
          %p266 = pneg %p147
        $region46: #{multi_head_attention.1} parent=39 // pred_check_branch
          %268 = sbr.rel (%p266) target = $region48
        $region47: #{multi_head_attention.1} parent=39 // pred_region
          %p269 = scmp.lt.s32.totalorder %s17, 1
          %s270 = scalar_select %p269, %s17, 1
          %s271 = smul.addr %s270, 16
          %s272 = smul.addr %s271, 8
          %s273 = scalar_lea.vmem %s5, %s272
        $region48: #{multi_head_attention.1} parent=39 // pred_fallthru
          _
      $region40: #{multi_head_attention.1} parent=5 // pred_fallthru
        _
      %p274 = scmp.le.s32.totalorder 1, %s17
      %p275 = scmp.lt.s32.totalorder %s17, 3
      %p276 = pnand %p274, %p275
      %p277 = pneg %p276
      // Predicated region
      $region49: #{multi_head_attention.1} parent=5 // pred_check
        _
      $region50: #{multi_head_attention.1} parent=5 // pred_check_branch
        %279 = sbr.rel (%p276) target = $region52
      $region51: #{multi_head_attention.1} parent=5 // pred_region
        %s280 = ssub.s32 %s17, 1
        %p281 = scmp.lt.s32.totalorder %s22, 1
        %s282 = scalar_select %p281, %s22, 1
        %s283 = smul.addr %s282, 2
        %s284 = smul.addr %s283, 8
        %s285 = scalar_lea.vmem %s0, %s284
        %p286 = pneg %p43
        %p287 = pneg %p40
        %p288 = pneg %p64
        %p289 = pneg %p61
        %p290 = pneg %p85
        %p291 = pneg %p82
        %p292 = pneg %p106
        %p293 = pneg %p103
        %p294 = pneg %p127
        %p295 = pneg %p124
        %p296 = scmp.lt.s32.totalorder %s22, 1
        %s297 = scalar_select %p296, %s22, 1
        %s298 = smul.addr %s297, 16
        %s299 = smul.addr %s298, 8
        %s300 = scalar_lea.vmem %s5, %s299
        %p301 = pneg %p153
        %p302 = pneg %p150
        %p303 = pneg %p174
        %p304 = pneg %p171
        %p305 = pneg %p195
        %p306 = pneg %p192
        %p307 = pneg %p221
        %p308 = pneg %p218
        %s309 = sand.u32 %s208, 1
        %s310 = scalar_lea.sflag [#allocation3], %s309
        %s311 = sand.u32 %s208, 1
        %s312 = smul.addr %s311, 16
        %s313 = scalar_lea.vmem [#allocation2], %s312
        %p314 = scmp.lt.s32.totalorder %s22, 1
        %s315 = scalar_select %p314, %s22, 1
        %s316 = smul.addr %s315, 2
        %s317 = smul.addr %s316, 8
        %s318 = scalar_lea.vmem %s0, %s317
        %p319 = scmp.lt.s32.totalorder %s22, 1
        %s320 = scalar_select %p319, %s22, 1
        %s321 = smul.addr %s320, 16
        %s322 = smul.addr %s321, 8
        %s323 = scalar_lea.vmem %s5, %s322
        %v324 = vld [vmem:[%s318] sm:$0xff]
        %v325 = vld [vmem:[%s318 + $0x8] sm:$0xff]
        %v326 = vld [vmem:[%s323] sm:$0xff]
        %v327 = vld [vmem:[%s323 + $0x8] sm:$0xff]
        %v328 = vld [vmem:[%s323 + $0x10] sm:$0xff]
        %v329 = vld [vmem:[%s323 + $0x18] sm:$0xff]
        %v330 = vld [vmem:[%s323 + $0x20] sm:$0xff]
        %v331 = vld [vmem:[%s323 + $0x28] sm:$0xff]
        %v332 = vld [vmem:[%s323 + $0x30] sm:$0xff]
        %v333 = vld [vmem:[%s323 + $0x38] sm:$0xff]
        %v334 = vld [vmem:[%s323 + $0x40] sm:$0xff]
        %v335 = vld [vmem:[%s323 + $0x48] sm:$0xff]
        %v336 = vld [vmem:[%s323 + $0x50] sm:$0xff]
        %v337 = vld [vmem:[%s323 + $0x58] sm:$0xff]
        %v338 = vld [vmem:[%s323 + $0x60] sm:$0xff]
        %v339 = vld [vmem:[%s323 + $0x68] sm:$0xff]
        %v340 = vld [vmem:[%s323 + $0x70] sm:$0xff]
        %v341 = vld [vmem:[%s323 + $0x78] sm:$0xff]
        %v342 = vld [vmem:[%s1] sm:$0xff]
        %v343 = vld [vmem:[%s1 + $0x8] sm:$0xff]
        %v344 = vld [vmem:[%s1 + $0x10] sm:$0xff]
        %v345 = vld [vmem:[%s1 + $0x18] sm:$0xff]
        %v346 = vld [vmem:[%s2] sm:$0x1]
        %v348 = vperm.slane %v346, 0
        %vm350 = vcmask 261120
        %v352 = vsel %vm350, %v324, 0
        %v355 = vsel %vm350, %v325, 0
        %357 = vmatpush.msra.mxu0 0.0
        %358 = vmatpush.msra.mxu0 0.0
        %359 = vmatpush.msra.mxu0 0.0
        %360 = vmatpush.msra.mxu0 0.0
        %361 = vmatpush.msra.mxu0 0.0
        %362 = vmatpush.msra.mxu0 0.0
        %363 = vmatpush.msra.mxu0 0.0
        %364 = vmatpush.msra.mxu0 0.0
        %365 = vmatpush.msra.mxu0 0.0
        %366 = vmatpush.msra.mxu0 0.0
        %367 = vmatpush.msra.mxu0 0.0
        %368 = vmatpush.msra.mxu0 0.0
        %369 = vmatpush.msra.mxu0 %v345
        %370 = vmatpush.msra.mxu0 %v344
        %371 = vmatpush.msra.mxu0 %v343
        %372 = vmatpush.msra.mxu0 %v342
        %373 = vmatmul.f32.gmra.mxu0 %v352
        %v374 = vpop.f32.mrf.mxu0
        %v375 = vadd.f32 %v348, %v374
        %376 = vmatmul.f32.gmra.mxu0 %v355
        %v377 = vpop.f32.mrf.mxu0
        %v378 = vadd.f32 %v348, %v377
        %379 = vdwg.mxu0
        %v380 = vld [vmem:[%s3] sm:$0xff]
        %v381 = vld [vmem:[%s3 + $0x8] sm:$0xff]
        %v382 = vld [vmem:[%s3 + $0x10] sm:$0xff]
        %v383 = vld [vmem:[%s3 + $0x18] sm:$0xff]
        %v384 = vld [vmem:[%s4] sm:$0x1]
        %v386 = vperm.slane %v384, 0
        %388 = vmatpush.msra.mxu0 0.0
        %389 = vmatpush.msra.mxu0 0.0
        %390 = vmatpush.msra.mxu0 0.0
        %391 = vmatpush.msra.mxu0 0.0
        %392 = vmatpush.msra.mxu0 0.0
        %393 = vmatpush.msra.mxu0 0.0
        %394 = vmatpush.msra.mxu0 0.0
        %395 = vmatpush.msra.mxu0 0.0
        %396 = vmatpush.msra.mxu0 0.0
        %397 = vmatpush.msra.mxu0 0.0
        %398 = vmatpush.msra.mxu0 0.0
        %399 = vmatpush.msra.mxu0 0.0
        %400 = vmatpush.msra.mxu0 %v383
        %401 = vmatpush.msra.mxu0 %v382
        %402 = vmatpush.msra.mxu0 %v381
        %403 = vmatpush.msra.mxu0 %v380
        %404 = vmatmul.f32.gmra.mxu0 %v352
        %v405 = vpop.f32.mrf.mxu0
        %v406 = vadd.f32 %v386, %v405
        %407 = vmatmul.f32.gmra.mxu0 %v355
        %v408 = vpop.f32.mrf.mxu0
        %v409 = vadd.f32 %v386, %v408
        %410 = vdwg.mxu0
        %427 = vrot.lane.b32.xlu0 %v326, 96
        %v428 = vpop.permute.xlu0 %427
        %429 = vrot.lane.b32.xlu0 %v327, 96
        %v430 = vpop.permute.xlu0 %429
        %431 = vrot.lane.b32.xlu0 %v328, 96
        %v432 = vpop.permute.xlu0 %431
        %433 = vrot.lane.b32.xlu0 %v329, 96
        %v434 = vpop.permute.xlu0 %433
        %435 = vrot.lane.b32.xlu0 %v330, 96
        %v436 = vpop.permute.xlu0 %435
        %437 = vrot.lane.b32.xlu0 %v331, 96
        %v438 = vpop.permute.xlu0 %437
        %439 = vrot.lane.b32.xlu0 %v332, 96
        %v440 = vpop.permute.xlu0 %439
        %441 = vrot.lane.b32.xlu0 %v333, 96
        %v442 = vpop.permute.xlu0 %441
        %443 = vrot.lane.b32.xlu0 %v334, 96
        %v444 = vpop.permute.xlu0 %443
        %445 = vrot.lane.b32.xlu0 %v335, 96
        %v446 = vpop.permute.xlu0 %445
        %447 = vrot.lane.b32.xlu0 %v336, 96
        %v448 = vpop.permute.xlu0 %447
        %449 = vrot.lane.b32.xlu0 %v337, 96
        %v450 = vpop.permute.xlu0 %449
        %451 = vrot.lane.b32.xlu0 %v338, 96
        %v452 = vpop.permute.xlu0 %451
        %453 = vrot.lane.b32.xlu0 %v339, 96
        %v454 = vpop.permute.xlu0 %453
        %455 = vrot.lane.b32.xlu0 %v340, 96
        %v456 = vpop.permute.xlu0 %455
        %457 = vrot.lane.b32.xlu0 %v341, 96
        %v458 = vpop.permute.xlu0 %457
        %v475 = vmul.f32 %v406, %v428
        %v476 = vmul.f32 %v409, %v430
        %v477 = vmul.f32 %v406, %v432
        %v478 = vmul.f32 %v409, %v434
        %v479 = vmul.f32 %v406, %v436
        %v480 = vmul.f32 %v409, %v438
        %v481 = vmul.f32 %v406, %v440
        %v482 = vmul.f32 %v409, %v442
        %v483 = vmul.f32 %v406, %v444
        %v484 = vmul.f32 %v409, %v446
        %v485 = vmul.f32 %v406, %v448
        %v486 = vmul.f32 %v409, %v450
        %v487 = vmul.f32 %v406, %v452
        %v488 = vmul.f32 %v409, %v454
        %v489 = vmul.f32 %v406, %v456
        %v490 = vmul.f32 %v409, %v458
        %v492 = vsel %vm350, %v375, 0
        %v495 = vsel %vm350, %v378, 0
        %v498 = vsel %vm350, %v475, 0
        %v501 = vsel %vm350, %v476, 0
        %v504 = vsel %vm350, %v477, 0
        %v507 = vsel %vm350, %v478, 0
        %v510 = vsel %vm350, %v479, 0
        %v513 = vsel %vm350, %v480, 0
        %v516 = vsel %vm350, %v481, 0
        %v519 = vsel %vm350, %v482, 0
        %v522 = vsel %vm350, %v483, 0
        %v525 = vsel %vm350, %v484, 0
        %v528 = vsel %vm350, %v485, 0
        %v531 = vsel %vm350, %v486, 0
        %v534 = vsel %vm350, %v487, 0
        %v537 = vsel %vm350, %v488, 0
        %v540 = vsel %vm350, %v489, 0
        %v543 = vsel %vm350, %v490, 0
        %545 = vmatpush.xpose.msra.mxu0 %v543
        %546 = vmatpush.xpose.msra.mxu0 %v540
        %547 = vmatpush.xpose.msra.mxu0 %v537
        %548 = vmatpush.xpose.msra.mxu0 %v534
        %549 = vmatpush.xpose.msra.mxu0 %v531
        %550 = vmatpush.xpose.msra.mxu0 %v528
        %551 = vmatpush.xpose.msra.mxu0 %v525
        %552 = vmatpush.xpose.msra.mxu0 %v522
        %553 = vmatpush.xpose.msra.mxu0 %v519
        %554 = vmatpush.xpose.msra.mxu0 %v516
        %555 = vmatpush.xpose.msra.mxu0 %v513
        %556 = vmatpush.xpose.msra.mxu0 %v510
        %557 = vmatpush.xpose.msra.mxu0 %v507
        %558 = vmatpush.xpose.msra.mxu0 %v504
        %559 = vmatpush.xpose.msra.mxu0 %v501
        %560 = vmatpush.xpose.msra.mxu0 %v498
        %561 = vmatmul.f32.gmra.mxu0 %v492
        %v562 = vpop.f32.mrf.mxu0
        %v563 = vadd.f32 0.0, %v562
        %564 = vmatmul.f32.gmra.mxu0 %v495
        %v565 = vpop.f32.mrf.mxu0
        %v566 = vadd.f32 0.0, %v565
        %567 = vdwg.mxu0
        %568 = vmax.xlane.f32.xlu0 %v563
        %v569 = vpop.xlane.xlu0 %568
        %570 = vmax.xlane.f32.xlu0 %v566
        %v571 = vpop.xlane.xlu0 %570
        %v572 = vsub.f32 %v563, %v569
        %v573 = vsub.f32 %v566, %v571
        %v574 = vmul.f32 %v572, 1.442695
        %v575 = vpow.pop %v574
        %v576 = vmul.f32 %v573, 1.442695
        %v577 = vpow.pop %v576
        %578 = vmatpush.msra.mxu0 %v341
        %579 = vmatpush.msra.mxu0 %v340
        %580 = vmatpush.msra.mxu0 %v339
        %581 = vmatpush.msra.mxu0 %v338
        %582 = vmatpush.msra.mxu0 %v337
        %583 = vmatpush.msra.mxu0 %v336
        %584 = vmatpush.msra.mxu0 %v335
        %585 = vmatpush.msra.mxu0 %v334
        %586 = vmatpush.msra.mxu0 %v333
        %587 = vmatpush.msra.mxu0 %v332
        %588 = vmatpush.msra.mxu0 %v331
        %589 = vmatpush.msra.mxu0 %v330
        %590 = vmatpush.msra.mxu0 %v329
        %591 = vmatpush.msra.mxu0 %v328
        %592 = vmatpush.msra.mxu0 %v327
        %593 = vmatpush.msra.mxu0 %v326
        %594 = vmatmul.f32.gmra.mxu0 %v575
        %v595 = vpop.f32.mrf.mxu0
        %v596 = vadd.f32 0.0, %v595
        %597 = vmatmul.f32.gmra.mxu0 %v577
        %v598 = vpop.f32.mrf.mxu0
        %v599 = vadd.f32 0.0, %v598
        %600 = vdwg.mxu0
        %v601 = vrcp.pop %v596
        %v602 = vrcp.pop %v599
        %v603 = vmul.f32 %v596, %v601
        %v604 = vmul.f32 %v599, %v602
        %v605 = vsub.f32 2.0, %v603
        %v606 = vsub.f32 2.0, %v604
        %v607 = vmul.f32 %v601, %v605
        %v608 = vmul.f32 %v602, %v606
        %611 = vrot.lane.b32.xlu0 %v607, 96
        %v612 = vpop.permute.xlu0 %611
        %613 = vrot.lane.b32.xlu0 %v608, 96
        %v614 = vpop.permute.xlu0 %613
        %v617 = vmul.f32 %v596, %v612
        %v618 = vmul.f32 %v599, %v614
        %v619 = vld [vmem:[%s6] sm:$0xff]
        %v620 = vld [vmem:[%s6 + $0x8] sm:$0xff]
        %v621 = vld [vmem:[%s6 + $0x10] sm:$0xff]
        %v622 = vld [vmem:[%s6 + $0x18] sm:$0xff]
        %v623 = vld [vmem:[%s7] sm:$0x1]
        %v625 = vperm.slane %v623, 0
        %v628 = vsel %vm350, %v617, 0
        %v631 = vsel %vm350, %v618, 0
        %633 = vmatpush.msra.mxu0 0.0
        %634 = vmatpush.msra.mxu0 0.0
        %635 = vmatpush.msra.mxu0 0.0
        %636 = vmatpush.msra.mxu0 0.0
        %637 = vmatpush.msra.mxu0 0.0
        %638 = vmatpush.msra.mxu0 0.0
        %639 = vmatpush.msra.mxu0 0.0
        %640 = vmatpush.msra.mxu0 0.0
        %641 = vmatpush.msra.mxu0 0.0
        %642 = vmatpush.msra.mxu0 0.0
        %643 = vmatpush.msra.mxu0 0.0
        %644 = vmatpush.msra.mxu0 0.0
        %645 = vmatpush.msra.mxu0 %v622
        %646 = vmatpush.msra.mxu0 %v621
        %647 = vmatpush.msra.mxu0 %v620
        %648 = vmatpush.msra.mxu0 %v619
        %649 = vmatmul.f32.gmra.mxu0 %v628
        %v650 = vpop.f32.mrf.mxu0
        %v651 = vadd.f32 %v625, %v650
        %652 = vmatmul.f32.gmra.mxu0 %v631
        %v653 = vpop.f32.mrf.mxu0
        %v654 = vadd.f32 %v625, %v653
        %655 = vdwg.mxu0
        %656 = vst.msk [vmem:[%s313] sm:$0xff] %vm350, %v651
        %657 = vst.msk [vmem:[%s313 + $0x8] sm:$0xff] %vm350, %v654
        %s658 = sand.u32 %s208, 1
        %s659 = scalar_lea.sflag [#allocation3], %s658
        %s660 = sand.u32 %s208, 1
        %s661 = smul.addr %s660, 16
        %s662 = scalar_lea.vmem [#allocation2], %s661
        // Predicated region
        $region53: #{multi_head_attention.1} parent=51 // pred_check
          %p663 = pneg %p218
        $region54: #{multi_head_attention.1} parent=51 // pred_check_branch
          %665 = sbr.rel (%p663) target = $region56
        $region55: #{multi_head_attention.1} parent=51 // pred_region
          %667 = vsyncadd %s659, 0
          %s668 = smul.addr %s22, 2
          %s669 = smul.addr %s668, 8
          %s670 = scalar_lea.hbm %s8, %s669
          %s671 = sshll.u32 %s662, 4
          %s672 = int_to_ptr.vmem [resolvable:$true] %s671
          %s673 = sshll.u32 %s670, 4
          %s674 = int_to_ptr.hbm [resolvable:$true] %s673
          %679 = dma.vmem_to_hbm [thread:$0]  %s672, 256, %s674, %s659, 128, 128, 8
        $region56: #{multi_head_attention.1} parent=51 // pred_fallthru
          _
      $region52: #{multi_head_attention.1} parent=5 // pred_fallthru
        _
      %p680 = scmp.le.s32.totalorder 2, %s17
      // Predicated region
      $region57: #{multi_head_attention.1} parent=5 // pred_check
        %p681 = pneg %p680
      $region58: #{multi_head_attention.1} parent=5 // pred_check_branch
        %683 = sbr.rel (%p681) target = $region60
      $region59: #{multi_head_attention.1} parent=5 // pred_region
        %s684 = ssub.s32 %s17, 2
        // Predicated region
        $region61: #{multi_head_attention.1} parent=59 // pred_check
          %p685 = pneg %p224
        $region62: #{multi_head_attention.1} parent=59 // pred_check_branch
          %687 = sbr.rel (%p685) target = $region64
        $region63: #{multi_head_attention.1} parent=59 // pred_region
          %s688 = sand.u32 %s209, 1
          %s689 = scalar_lea.sflag [#allocation3], %s688
          %s690 = sand.u32 %s209, 1
          %s691 = smul.addr %s690, 16
          %s692 = scalar_lea.vmem [#allocation2], %s691
          %694 = dma.done %s689, 256
        $region64: #{multi_head_attention.1} parent=59 // pred_fallthru
          _
      $region60: #{multi_head_attention.1} parent=5 // pred_fallthru
        _
    $region6: #{multi_head_attention.1} parent=1 // loop_footer
      %s21 = sadd.s32 1, %s17
    $region7: #{multi_head_attention.1} parent=1 // loop_footer_branch
      %16 = sbr.rel target = $region3
    $region8: #{multi_head_attention.1} parent=1 // loop_exit
      _
    %695 = vsyncpa [#allocation3], 1
    %s696 = scalar_lea.sflag [#allocation3], 1
    %697 = vsyncpa %s696, 1

</llo_original>
